<compile_context>
chip_gen: v6e
topology: v6e:2x2x1
jax: 0.10.0
libtpu: 0.0.40
codegen_flags: <defaults>
</compile_context>

<pallas_src>
import jax
import jax.numpy as jnp
from jax.experimental import pallas as pl
from jax.experimental.pallas import tpu as pltpu


def _round_up(x, m):
    return ((x + m - 1) // m) * m


def semlp_kernel(x_ref, w1_ref, b1_ref, w2_ref, b2_ref, o_ref):
    # fc1: x @ W1 (bf16 operands on the MXU, f32 accumulation), bias + ReLU in f32.
    x = x_ref[...]
    h = jnp.dot(x, w1_ref[...], preferred_element_type=jnp.float32)
    h = jnp.maximum(h + b1_ref[...], 0.0)
    # fc2: cast the hidden activations back to the compute dtype for the MXU,
    # accumulate in f32, add bias in f32, then cast to the output dtype.
    h = h.astype(w2_ref.dtype)
    y = jnp.dot(h, w2_ref[...], preferred_element_type=jnp.float32)
    o_ref[...] = (y + b2_ref[...]).astype(o_ref.dtype)


def prepare_semlp_params(w1, b1, w2, b2, *, compute_dtype=jnp.bfloat16):
    """One-time parameter prep (call at load time, NOT per forward):
       - transpose PyTorch (out, in) weights to (in, out),
       - zero-pad the hidden/output feature dim to a multiple of 128,
       - cast weights to the MXU compute dtype; keep biases in f32."""
    hidden_dim, input_dim = w1.shape
    hid_pad = _round_up(hidden_dim, 128)

    w1_t = jnp.zeros((input_dim, hid_pad), compute_dtype)
    w1_t = w1_t.at[:, :hidden_dim].set(w1.T.astype(compute_dtype))
    w2_t = jnp.zeros((hid_pad, hid_pad), compute_dtype)
    w2_t = w2_t.at[:hidden_dim, :hidden_dim].set(w2.T.astype(compute_dtype))
    b1_r = jnp.zeros((1, hid_pad), jnp.float32).at[:, :hidden_dim].set(
        b1.astype(jnp.float32))
    b2_r = jnp.zeros((1, hid_pad), jnp.float32).at[:, :hidden_dim].set(
        b2.astype(jnp.float32))

    return dict(w1_t=w1_t, b1=b1_r, w2_t=w2_t, b2=b2_r,
                input_dim=input_dim, hidden_dim=hidden_dim, hid_pad=hid_pad,
                compute_dtype=compute_dtype)


def semlp_forward(x, params, *, tile_m=512):
    """x: (N, input_dim) activations. Returns (N, hidden_dim) in x.dtype."""
    N, input_dim = x.shape
    assert input_dim == params["input_dim"], "input feature mismatch"
    hid_pad = params["hid_pad"]
    hidden_dim = params["hidden_dim"]
    compute_dtype = params["compute_dtype"]
    out_dtype = x.dtype

    # Batch tiling: large MXU-friendly tile, clamped/padded (no divisibility
    # requirement on N). tile_m is kept a multiple of 8 (sublane alignment).
    tile_m = max(8, min(_round_up(tile_m, 8), _round_up(N, 8)))
    n_pad = _round_up(N, tile_m)
    x_c = x.astype(compute_dtype)
    if n_pad != N:
        x_c = jnp.pad(x_c, ((0, n_pad - N), (0, 0)))

    grid = (n_pad // tile_m,)

    # VMEM budget: resident weights/biases + double-buffered x and out tiles.
    w_itemsize = jnp.dtype(compute_dtype).itemsize
    resident = ((params["w1_t"].size + params["w2_t"].size) * w_itemsize
                + (params["b1"].size + params["b2"].size) * 4)
    streamed = (2 * tile_m * input_dim * w_itemsize
                + 2 * tile_m * hid_pad * jnp.dtype(out_dtype).itemsize)
    vmem_limit = min(int(1.5 * (resident + streamed)) + (8 << 20), 100 << 20)

    out_pad = pl.pallas_call(
        semlp_kernel,
        out_shape=jax.ShapeDtypeStruct((n_pad, hid_pad), out_dtype),
        grid_spec=pltpu.PrefetchScalarGridSpec(
            num_scalar_prefetch=0,
            grid=grid,
            in_specs=[
                # batch-tiled activations (streamed, double-buffered)
                pl.BlockSpec((tile_m, input_dim), lambda i: (i, 0)),
                # weights / biases: constant index -> VMEM-resident, no re-DMA
                pl.BlockSpec((input_dim, hid_pad), lambda i: (0, 0)),
                pl.BlockSpec((1, hid_pad), lambda i: (0, 0)),
                pl.BlockSpec((hid_pad, hid_pad), lambda i: (0, 0)),
                pl.BlockSpec((1, hid_pad), lambda i: (0, 0)),
            ],
            out_specs=pl.BlockSpec((tile_m, hid_pad), lambda i: (i, 0)),
        ),
        compiler_params=pltpu.CompilerParams(
            dimension_semantics=("parallel",),
            vmem_limit_bytes=vmem_limit,
        ),
    )(x_c, params["w1_t"], params["b1"], params["w2_t"], params["b2"])

    # Strip batch and lane padding.
    return out_pad[:N, :hidden_dim]


def _init_linear(key, out_features, in_features, dtype=jnp.float32):
    """Deterministic init mimicking PyTorch nn.Linear defaults."""
    kw, kb = jax.random.split(key)
    bound = 1.0 / (in_features ** 0.5)
    w = jax.random.uniform(kw, (out_features, in_features), dtype, -bound, bound)
    b = jax.random.uniform(kb, (out_features,), dtype, -bound, bound)
    return w, b


if __name__ == "__main__":
    key = jax.random.PRNGKey(0)
    k_x, k_fc1, k_fc2 = jax.random.split(key, 3)

    # Small demo shapes consistent with the module: (batch, input_dim) -> (batch, hidden_dim)
    N, input_dim, hidden_dim = 16, 48, 32

    x = jax.random.normal(k_x, (N, input_dim), jnp.float32)
    w1, b1 = _init_linear(k_fc1, hidden_dim, input_dim)   # fc1: input_dim -> hidden_dim
    w2, b2 = _init_linear(k_fc2, hidden_dim, hidden_dim)  # fc2: hidden_dim -> hidden_dim

    # One-time parameter prep (transpose / pad / bf16 cast).
    params = prepare_semlp_params(w1, b1, w2, b2)

    out = semlp_forward(x, params)
    out = jax.block_until_ready(out)
    assert out.shape == (N, hidden_dim)

    # Reference mirroring the kernel's precision (bf16 operands, f32 accumulation).
    xb = x.astype(jnp.bfloat16)
    hb = jnp.maximum(
        jnp.dot(xb, w1.T.astype(jnp.bfloat16), preferred_element_type=jnp.float32) + b1,
        0.0)
    ref_bf16 = jnp.dot(hb.astype(jnp.bfloat16), w2.T.astype(jnp.bfloat16),
                       preferred_element_type=jnp.float32) + b2
    assert jnp.allclose(out, ref_bf16, atol=1e-3, rtol=1e-3), "mismatch vs bf16 reference"

    # Loose sanity check against the pure-f32 PyTorch-equivalent forward.
    ref_f32 = jnp.maximum(x @ w1.T + b1, 0.0) @ w2.T + b2
    assert jnp.allclose(out, ref_f32, atol=5e-2, rtol=5e-2), "mismatch vs f32 reference"

    print("KERNEL_OK")
</pallas_src>

<mosaic_0001>
module attributes {stable_mosaic.version = 11 : i64} {
  func.func @semlp_kernel(%arg0: i32, %arg1: memref<16x48xbf16, #tpu.memory_space<vmem>>, %arg2: memref<48x128xbf16, #tpu.memory_space<vmem>>, %arg3: memref<1x128xf32, #tpu.memory_space<vmem>>, %arg4: memref<128x128xbf16, #tpu.memory_space<vmem>>, %arg5: memref<1x128xf32, #tpu.memory_space<vmem>>, %arg6: memref<16x128xf32, #tpu.memory_space<vmem>>) attributes {dimension_semantics = [#tpu.dimension_semantics<parallel>], iteration_bounds = array<i64: 1>, scalar_prefetch = 0 : i64, scratch_operands = 0 : i64, tpu.core_type = #tpu.core_type<tc>, window_params = [{transform_indices = @transform_0, window_bounds = array<i64: 16, 48>}, {pipeline_mode = #tpu.pipeline_mode<synchronous>, transform_indices = @transform_1, window_bounds = array<i64: 48, 128>}, {pipeline_mode = #tpu.pipeline_mode<synchronous>, transform_indices = @transform_2, window_bounds = array<i64: 1, 128>}, {pipeline_mode = #tpu.pipeline_mode<synchronous>, transform_indices = @transform_3, window_bounds = array<i64: 128, 128>}, {pipeline_mode = #tpu.pipeline_mode<synchronous>, transform_indices = @transform_4, window_bounds = array<i64: 1, 128>}, {transform_indices = @transform_5, window_bounds = array<i64: 16, 128>}]} {
    %c0 = arith.constant 0 : index
    %c0_0 = arith.constant 0 : index
    %0 = vector.load %arg1[%c0, %c0_0] : memref<16x48xbf16, #tpu.memory_space<vmem>>, vector<16x48xbf16>
    %c0_1 = arith.constant 0 : index
    %c0_2 = arith.constant 0 : index
    %1 = vector.load %arg2[%c0_1, %c0_2] : memref<48x128xbf16, #tpu.memory_space<vmem>>, vector<48x128xbf16>
    %cst = arith.constant dense<0.000000e+00> : vector<16x128xf32>
    %2 = tpu.matmul %0, %1, %cst {dimension_numbers = #tpu.dot_dimension_numbers<[1], [0], [0], [1], [0, 0, 1, 1], [], []>} : vector<16x48xbf16>, vector<48x128xbf16>, vector<16x128xf32> -> vector<16x128xf32>
    %c0_3 = arith.constant 0 : index
    %c0_4 = arith.constant 0 : index
    %3 = vector.load %arg3[%c0_3, %c0_4] : memref<1x128xf32, #tpu.memory_space<vmem>>, vector<1x128xf32>
    %4 = vector.broadcast %3 : vector<1x128xf32> to vector<16x128xf32>
    %5 = arith.addf %2, %4 : vector<16x128xf32>
    %cst_5 = arith.constant 0.000000e+00 : f32
    %6 = vector.broadcast %cst_5 : f32 to vector<16x128xf32>
    %7 = arith.maximumf %5, %6 : vector<16x128xf32>
    %8 = arith.truncf %7 : vector<16x128xf32> to vector<16x128xbf16>
    %c0_6 = arith.constant 0 : index
    %c0_7 = arith.constant 0 : index
    %9 = vector.load %arg4[%c0_6, %c0_7] : memref<128x128xbf16, #tpu.memory_space<vmem>>, vector<128x128xbf16>
    %cst_8 = arith.constant dense<0.000000e+00> : vector<16x128xf32>
    %10 = tpu.matmul %8, %9, %cst_8 {dimension_numbers = #tpu.dot_dimension_numbers<[1], [0], [0], [1], [0, 0, 1, 1], [], []>} : vector<16x128xbf16>, vector<128x128xbf16>, vector<16x128xf32> -> vector<16x128xf32>
    %c0_9 = arith.constant 0 : index
    %c0_10 = arith.constant 0 : index
    %11 = vector.load %arg5[%c0_9, %c0_10] : memref<1x128xf32, #tpu.memory_space<vmem>>, vector<1x128xf32>
    %12 = vector.broadcast %11 : vector<1x128xf32> to vector<16x128xf32>
    %13 = arith.addf %10, %12 : vector<16x128xf32>
    %c0_11 = arith.constant 0 : index
    %c0_12 = arith.constant 0 : index
    %14 = vector.load %arg6[%c0_11, %c0_12] : memref<16x128xf32, #tpu.memory_space<vmem>>, vector<16x128xf32>
    tpu.vector_store %arg6[%c0_11, %c0_12], %13 {strides = array<i32>} : memref<16x128xf32, #tpu.memory_space<vmem>>, vector<16x128xf32>,
    return
  }
  func.func @transform_0(%arg0: i32) -> (i32, i32) {
    %c0_i32 = arith.constant 0 : i32
    %c0_i32_0 = arith.constant 0 : i32
    return %arg0, %c0_i32 : i32, i32
  }
  func.func @transform_1(%arg0: i32) -> (i32, i32) {
    %c0_i32 = arith.constant 0 : i32
    %c0_i32_0 = arith.constant 0 : i32
    %c0_i32_1 = arith.constant 0 : i32
    return %c0_i32, %c0_i32_0 : i32, i32
  }
  func.func @transform_2(%arg0: i32) -> (i32, i32) {
    %c0_i32 = arith.constant 0 : i32
    %c0_i32_0 = arith.constant 0 : i32
    %c0_i32_1 = arith.constant 0 : i32
    return %c0_i32, %c0_i32_0 : i32, i32
  }
  func.func @transform_3(%arg0: i32) -> (i32, i32) {
    %c0_i32 = arith.constant 0 : i32
    %c0_i32_0 = arith.constant 0 : i32
    %c0_i32_1 = arith.constant 0 : i32
    return %c0_i32, %c0_i32_0 : i32, i32
  }
  func.func @transform_4(%arg0: i32) -> (i32, i32) {
    %c0_i32 = arith.constant 0 : i32
    %c0_i32_0 = arith.constant 0 : i32
    %c0_i32_1 = arith.constant 0 : i32
    return %c0_i32, %c0_i32_0 : i32, i32
  }
  func.func @transform_5(%arg0: i32) -> (i32, i32) {
    %c0_i32 = arith.constant 0 : i32
    %c0_i32_0 = arith.constant 0 : i32
    return %arg0, %c0_i32 : i32, i32
  }
}

</mosaic_0001>

<llo_original>
// kernel: tpu_custom_call.1
$region0: #{tpu_custom_call.1}
  #allocation0 [shape = 'u32[]', space=smem, size = 0x4, offset = 0x4, fixed_abs, tag = 'smem constant byte address 0x4 - core index']
  #allocation1 [shape = 'u32[144,128]{1,0:T(1,128)}', space=vmem, size = 0x12000, scoped, tag = 'internal scratch']
  %s0 = inlined_call_operand.hbm [shape: bf16[16,48], index: 0, kind: input, shape index: {}]
  %s1 = inlined_call_operand.hbm [shape: bf16[48,128], index: 1, kind: input, shape index: {}]
  %s2 = inlined_call_operand.vmem [shape: f32[1,128], index: 2, kind: input, shape index: {}]
  %s3 = inlined_call_operand.hbm [shape: bf16[128,128], index: 3, kind: input, shape index: {}]
  %s4 = inlined_call_operand.vmem [shape: f32[1,128], index: 4, kind: input, shape index: {}]
  %s5 = inlined_call_operand.hbm [shape: f32[16,128], index: 5, kind: output, shape index: {}]
  %s6 = sld [smem:[#allocation0]]
  $region42: #{tpu_custom_call.1} parent=0
    _
  %s8 = ssub.s32 1, %s6
  %s9 = scalar_select 0, %s8, %s6
  $region1: #{tpu_custom_call.1} parent=0
    #allocation2 [shape = 'u8[4096]{0}', space=vmem, size = 0x1000, scoped, tag = 'input window, operand 0, single buffered']
    #allocation3 [shape = 's32[1]{0}', space=sflag, size = 0x4, scoped, tag = 'scoped memory for tpu_custom_call.1']
    #allocation4 [shape = 's32[1]{0}', space=sflag, size = 0x4, scoped, tag = 'scoped memory for tpu_custom_call.1']
    #allocation5 [shape = 'u8[12288]{0}', space=vmem, size = 0x3000, scoped, tag = 'input window, operand 1, single buffered']
    #allocation6 [shape = 's32[1]{0}', space=sflag, size = 0x4, scoped, tag = 'scoped memory for tpu_custom_call.1']
    #allocation7 [shape = 'u8[32768]{0}', space=vmem, size = 0x8000, scoped, tag = 'input window, operand 3, single buffered']
    #allocation8 [shape = 'u8[8192]{0}', space=vmem, size = 0x2000, scoped, tag = 'output window, operand 0, single buffered']
    %10 = vsyncpa [#allocation3], 0
    %11 = vsyncpa [#allocation6], 0
    %12 = vsyncpa [#allocation4], 0
    // Predicated region
    $region2: #{tpu_custom_call.1} parent=1 // pred_check
      _
    $region3: #{tpu_custom_call.1} parent=1 // pred_check_branch
      %14 = sbr.rel (0) target = $region5
    $region4: #{tpu_custom_call.1} parent=1 // pred_region
      %s16 = ssub.s32 128, 128
      %17 = vsyncadd [#allocation3], %s16
      %s18 = sshll.u32 [#allocation2], 4
      %s19 = int_to_ptr.vmem [resolvable:$true] %s18
      %24 = dma.hbm_to_vmem [thread:$0]  %s0, 128, %s19, [#allocation3], 64, 64, 4
    $region5: #{tpu_custom_call.1} parent=1 // pred_fallthru
      _
    // Predicated region
    $region6: #{tpu_custom_call.1} parent=1 // pred_check
      _
    $region7: #{tpu_custom_call.1} parent=1 // pred_check_branch
      %26 = sbr.rel (0) target = $region9
    $region8: #{tpu_custom_call.1} parent=1 // pred_region
      %s28 = ssub.s32 384, 384
      %29 = vsyncadd [#allocation6], %s28
      %s30 = sshll.u32 [#allocation5], 4
      %s31 = int_to_ptr.vmem [resolvable:$true] %s30
      %36 = dma.hbm_to_vmem [thread:$0]  %s1, 384, %s31, [#allocation6], 64, 64, 4
    $region9: #{tpu_custom_call.1} parent=1 // pred_fallthru
      _
    // Predicated region
    $region10: #{tpu_custom_call.1} parent=1 // pred_check
      _
    $region11: #{tpu_custom_call.1} parent=1 // pred_check_branch
      %38 = sbr.rel (0) target = $region13
    $region12: #{tpu_custom_call.1} parent=1 // pred_region
      _
    $region13: #{tpu_custom_call.1} parent=1 // pred_fallthru
      _
    // Predicated region
    $region14: #{tpu_custom_call.1} parent=1 // pred_check
      _
    $region15: #{tpu_custom_call.1} parent=1 // pred_check_branch
      %40 = sbr.rel (0) target = $region17
    $region16: #{tpu_custom_call.1} parent=1 // pred_region
      %s42 = ssub.s32 1024, 1024
      %43 = vsyncadd [#allocation6], %s42
      %s44 = sshll.u32 [#allocation7], 4
      %s45 = int_to_ptr.vmem [resolvable:$true] %s44
      %50 = dma.hbm_to_vmem [thread:$0]  %s3, 1024, %s45, [#allocation6], 64, 64, 4
    $region17: #{tpu_custom_call.1} parent=1 // pred_fallthru
      _
    // Predicated region
    $region18: #{tpu_custom_call.1} parent=1 // pred_check
      _
    $region19: #{tpu_custom_call.1} parent=1 // pred_check_branch
      %52 = sbr.rel (0) target = $region21
    $region20: #{tpu_custom_call.1} parent=1 // pred_region
      _
    $region21: #{tpu_custom_call.1} parent=1 // pred_fallthru
      _
    // Predicated region
    $region22: #{tpu_custom_call.1} parent=1 // pred_check
      _
    $region23: #{tpu_custom_call.1} parent=1 // pred_check_branch
      %54 = sbr.rel (0) target = $region25
    $region24: #{tpu_custom_call.1} parent=1 // pred_region
      %55 = dma.done [#allocation3], 128
    $region25: #{tpu_custom_call.1} parent=1 // pred_fallthru
      _
    // Predicated region
    $region26: #{tpu_custom_call.1} parent=1 // pred_check
      _
    $region27: #{tpu_custom_call.1} parent=1 // pred_check_branch
      %57 = sbr.rel (0) target = $region29
    $region28: #{tpu_custom_call.1} parent=1 // pred_region
      %58 = dma.done [#allocation6], 384
    $region29: #{tpu_custom_call.1} parent=1 // pred_fallthru
      _
    // Predicated region
    $region30: #{tpu_custom_call.1} parent=1 // pred_check
      _
    $region31: #{tpu_custom_call.1} parent=1 // pred_check_branch
      %60 = sbr.rel (0) target = $region33
    $region32: #{tpu_custom_call.1} parent=1 // pred_region
      %61 = dma.done [#allocation6], 1024
    $region33: #{tpu_custom_call.1} parent=1 // pred_fallthru
      _
    %v63 = vld [vmem:[#allocation2] sm:$0xf]
    %v64 = vld [vmem:[#allocation2 + $0x4] sm:$0xf]
    %v65 = vld [vmem:[#allocation5] sm:$0xf]
    %v66 = vld [vmem:[#allocation5 + $0x4] sm:$0xf]
    %v67 = vld [vmem:[#allocation5 + $0x8] sm:$0xf]
    %v68 = vld [vmem:[#allocation5 + $0xc] sm:$0xf]
    %v69 = vld [vmem:[#allocation5 + $0x10] sm:$0xf]
    %v70 = vld [vmem:[#allocation5 + $0x14] sm:$0xf]
    %v71 = vld [vmem:[%s2] sm:$0x1]
    %v73 = vlaneseq
    %v74 = vshrl.u32 %v73, 7
    %v75 = vsub.s32 0, %v74
    %v76 = vrot.slane %v71, %v75
    %v80 = vunpack.c.l.b16 %v63
    %v81 = vunpack.c.l.b16 %v64
    %v82 = vpack.c.b16 %v81, %v80
    %v89 = vunpack.c.l.b16 %v65
    %v90 = vunpack.c.l.b16 %v66
    %v91 = vunpack.c.l.b16 %v67
    %v92 = vunpack.c.l.b16 %v68
    %v93 = vunpack.c.l.b16 %v69
    %v94 = vunpack.c.l.b16 %v70
    %v95 = vpack.c.b16 %v90, %v89
    %v96 = vpack.c.b16 %v92, %v91
    %v97 = vpack.c.b16 %v94, %v93
    %vm101 = vcmask 392192
    %v103 = vsel %vm101, %v82, 0
    %105 = vmatprep.subr.bf16.mxu0 0
    %106 = vmatpush1.bf16.msra.mxu0 0
    %107 = vmatprep.subr.bf16.mxu0 0
    %108 = vmatpush1.bf16.msra.mxu0 0
    %109 = vmatprep.subr.bf16.mxu0 0
    %110 = vmatpush1.bf16.msra.mxu0 0
    %111 = vmatprep.subr.bf16.mxu0 0
    %112 = vmatpush1.bf16.msra.mxu0 0
    %113 = vmatprep.subr.bf16.mxu0 0
    %114 = vmatpush1.bf16.msra.mxu0 0
    %115 = vmatprep.subr.bf16.mxu0 0
    %116 = vmatpush1.bf16.msra.mxu0 %v97
    %117 = vmatprep.subr.bf16.mxu0 0
    %118 = vmatpush1.bf16.msra.mxu0 %v96
    %119 = vmatprep.subr.bf16.mxu0 0
    %120 = vmatpush1.bf16.msra.mxu0 %v95
    %121 = vmatprep.subr.bf16.mxu0 0
    %122 = vmatpush2.bf16.msra.mxu0 0
    %123 = vmatprep.subr.bf16.mxu0 0
    %124 = vmatpush2.bf16.msra.mxu0 0
    %125 = vmatprep.subr.bf16.mxu0 0
    %126 = vmatpush2.bf16.msra.mxu0 0
    %127 = vmatprep.subr.bf16.mxu0 0
    %128 = vmatpush2.bf16.msra.mxu0 0
    %129 = vmatprep.subr.bf16.mxu0 0
    %130 = vmatpush2.bf16.msra.mxu0 0
    %131 = vmatprep.subr.bf16.mxu0 0
    %132 = vmatpush2.bf16.msra.mxu0 0
    %133 = vmatprep.subr.bf16.mxu0 0
    %134 = vmatpush2.bf16.msra.mxu0 0
    %135 = vmatprep.subr.bf16.mxu0 0
    %136 = vmatpush2.bf16.msra.mxu0 0
    %137 = vmatprep.mubr.bf16.mxu0 0
    %138 = vmatmul.mubr.bf16.gmra.mxu0 %v103
    %v139 = vpop.f32.mrf.mxu0
    %v140 = vadd.f32 %v76, %v139
    %v141 = vpop.f32.mrf.mxu0
    %v142 = vpop.f32.mrf.mxu0
    %v143 = vadd.f32 %v76, %v142
    %v144 = vpop.f32.mrf.mxu0
    %145 = vdwg.mxu0
    %v146 = vmax.f32 %v140, 0.0
    %v147 = vmax.f32 %v143, 0.0
    %v148 = vpack.c.bf16 %v147, %v146
    %v149 = vld [vmem:[#allocation7] sm:$0xf]
    %v150 = vld [vmem:[#allocation7 + $0x4] sm:$0xf]
    %v151 = vld [vmem:[#allocation7 + $0x8] sm:$0xf]
    %v152 = vld [vmem:[#allocation7 + $0xc] sm:$0xf]
    %v153 = vld [vmem:[#allocation7 + $0x10] sm:$0xf]
    %v154 = vld [vmem:[#allocation7 + $0x14] sm:$0xf]
    %v155 = vld [vmem:[#allocation7 + $0x18] sm:$0xf]
    %v156 = vld [vmem:[#allocation7 + $0x1c] sm:$0xf]
    %v157 = vld [vmem:[#allocation7 + $0x20] sm:$0xf]
    %v158 = vld [vmem:[#allocation7 + $0x24] sm:$0xf]
    %v159 = vld [vmem:[#allocation7 + $0x28] sm:$0xf]
    %v160 = vld [vmem:[#allocation7 + $0x2c] sm:$0xf]
    %v161 = vld [vmem:[#allocation7 + $0x30] sm:$0xf]
    %v162 = vld [vmem:[#allocation7 + $0x34] sm:$0xf]
    %v163 = vld [vmem:[#allocation7 + $0x38] sm:$0xf]
    %v164 = vld [vmem:[#allocation7 + $0x3c] sm:$0xf]
    %v165 = vld [vmem:[%s4] sm:$0x1]
    %v167 = vlaneseq
    %v168 = vshrl.u32 %v167, 7
    %v169 = vsub.s32 0, %v168
    %v170 = vrot.slane %v165, %v169
    %v188 = vunpack.c.l.b16 %v149
    %v189 = vunpack.c.l.b16 %v150
    %v190 = vunpack.c.l.b16 %v151
    %v191 = vunpack.c.l.b16 %v152
    %v192 = vunpack.c.l.b16 %v153
    %v193 = vunpack.c.l.b16 %v154
    %v194 = vunpack.c.l.b16 %v155
    %v195 = vunpack.c.l.b16 %v156
    %v196 = vunpack.c.l.b16 %v157
    %v197 = vunpack.c.l.b16 %v158
    %v198 = vunpack.c.l.b16 %v159
    %v199 = vunpack.c.l.b16 %v160
    %v200 = vunpack.c.l.b16 %v161
    %v201 = vunpack.c.l.b16 %v162
    %v202 = vunpack.c.l.b16 %v163
    %v203 = vunpack.c.l.b16 %v164
    %v204 = vpack.c.b16 %v189, %v188
    %v205 = vpack.c.b16 %v191, %v190
    %v206 = vpack.c.b16 %v193, %v192
    %v207 = vpack.c.b16 %v195, %v194
    %v208 = vpack.c.b16 %v197, %v196
    %v209 = vpack.c.b16 %v199, %v198
    %v210 = vpack.c.b16 %v201, %v200
    %v211 = vpack.c.b16 %v203, %v202
    %220 = vmatprep.subr.bf16.mxu0 0
    %221 = vmatpush1.bf16.msra.mxu0 %v211
    %222 = vmatprep.subr.bf16.mxu0 0
    %223 = vmatpush1.bf16.msra.mxu0 %v210
    %224 = vmatprep.subr.bf16.mxu0 0
    %225 = vmatpush1.bf16.msra.mxu0 %v209
    %226 = vmatprep.subr.bf16.mxu0 0
    %227 = vmatpush1.bf16.msra.mxu0 %v208
    %228 = vmatprep.subr.bf16.mxu0 0
    %229 = vmatpush1.bf16.msra.mxu0 %v207
    %230 = vmatprep.subr.bf16.mxu0 0
    %231 = vmatpush1.bf16.msra.mxu0 %v206
    %232 = vmatprep.subr.bf16.mxu0 0
    %233 = vmatpush1.bf16.msra.mxu0 %v205
    %234 = vmatprep.subr.bf16.mxu0 0
    %235 = vmatpush1.bf16.msra.mxu0 %v204
    %236 = vmatprep.subr.bf16.mxu0 0
    %237 = vmatpush2.bf16.msra.mxu0 0
    %238 = vmatprep.subr.bf16.mxu0 0
    %239 = vmatpush2.bf16.msra.mxu0 0
    %240 = vmatprep.subr.bf16.mxu0 0
    %241 = vmatpush2.bf16.msra.mxu0 0
    %242 = vmatprep.subr.bf16.mxu0 0
    %243 = vmatpush2.bf16.msra.mxu0 0
    %244 = vmatprep.subr.bf16.mxu0 0
    %245 = vmatpush2.bf16.msra.mxu0 0
    %246 = vmatprep.subr.bf16.mxu0 0
    %247 = vmatpush2.bf16.msra.mxu0 0
    %248 = vmatprep.subr.bf16.mxu0 0
    %249 = vmatpush2.bf16.msra.mxu0 0
    %250 = vmatprep.subr.bf16.mxu0 0
    %251 = vmatpush2.bf16.msra.mxu0 0
    %252 = vmatprep.mubr.bf16.mxu0 0
    %253 = vmatmul.mubr.bf16.gmra.mxu0 %v148
    %v254 = vpop.f32.mrf.mxu0
    %v255 = vadd.f32 %v170, %v254
    %v256 = vpop.f32.mrf.mxu0
    %v257 = vpop.f32.mrf.mxu0
    %v258 = vadd.f32 %v170, %v257
    %v259 = vpop.f32.mrf.mxu0
    %260 = vdwg.mxu0
    %261 = vst [vmem:[#allocation8] sm:$0xff] %v255
    %262 = vst [vmem:[#allocation8 + $0x8] sm:$0xff] %v258
    // Predicated region
    $region34: #{tpu_custom_call.1} parent=1 // pred_check
      _
    $region35: #{tpu_custom_call.1} parent=1 // pred_check_branch
      %264 = sbr.rel (0) target = $region37
    $region36: #{tpu_custom_call.1} parent=1 // pred_region
      %s266 = ssub.s32 256, 256
      %267 = vsyncadd [#allocation4], %s266
      %s268 = sshll.u32 [#allocation8], 4
      %s269 = int_to_ptr.vmem [resolvable:$true] %s268
      %274 = dma.vmem_to_hbm [thread:$0]  %s269, 256, %s5, [#allocation4], 128, 128, 8
    $region37: #{tpu_custom_call.1} parent=1 // pred_fallthru
      _
    // Predicated region
    $region38: #{tpu_custom_call.1} parent=1 // pred_check
      _
    $region39: #{tpu_custom_call.1} parent=1 // pred_check_branch
      %276 = sbr.rel (0) target = $region41
    $region40: #{tpu_custom_call.1} parent=1 // pred_region
      %277 = dma.done [#allocation4], 256
    $region41: #{tpu_custom_call.1} parent=1 // pred_fallthru
      _
    %278 = vsyncpa [#allocation3], 1
    %279 = vsyncpa [#allocation6], 1
    %280 = vsyncpa [#allocation4], 1

</llo_original>
